<compile_context>
chip_gen: v6e
topology: v6e:2x2x1
jax: 0.10.0
libtpu: 0.0.40
codegen_flags: <defaults>
</compile_context>

<pallas_src>
import math

import jax
import jax.numpy as jnp
import numpy as np
from jax import lax
from jax.experimental import pallas as pl
from jax.experimental.pallas import tpu as pltpu

_LANES = 128
_SUBLANES = 8
_VREG = _SUBLANES * _LANES  # 1024 f32 elements per vreg


def _fps_kernel(start_ref, nvalid_ref, coords_ref, planes_ref, out_ref,
                min_dist_ref):
    d_dim, rows, lanes = planes_ref.shape
    n_pad = rows * lanes
    num_samples = out_ref.shape[0]
    n_valid = nvalid_ref[0]

    # Dense (rows, 128) layout: linear point index = row * 128 + col.
    # Hoisted out of the loop (JAX does not CSE broadcast/iota inside loops).
    row = lax.broadcasted_iota(jnp.int32, (rows, lanes), 0)
    col = lax.broadcasted_iota(jnp.int32, (rows, lanes), 1)
    lin = row * lanes + col
    valid = lin < n_valid

    # Padded slots get -1 so they can never win the argmax (real dists >= 0
    # with the (x - sel)^2 formulation).
    min_dist_ref[...] = jnp.where(valid, jnp.float32(3.4e38), jnp.float32(-1.0))

    big_idx = jnp.int32(n_pad)

    def body(s, cur):
        # record the currently selected index
        out_ref[s] = cur

        # squared distance from every point to the selected point, computed
        # on full (8,128)-dense vregs; selected coords are scalar SMEM reads.
        dist = jnp.zeros((rows, lanes), jnp.float32)
        for d in range(d_dim):                       # static unroll over D
            sel_d = coords_ref[d * n_pad + cur]      # scalar gather from SMEM
            diff = planes_ref[d] - sel_d             # (rows, 128)
            dist = dist + diff * diff

        # online min-distance to the selected set
        md = jnp.minimum(min_dist_ref[...], dist)
        min_dist_ref[...] = md

        # farthest point = argmax of min-distance, first occurrence on ties
        # (smallest linear index among the maxima).
        m = jnp.max(md)
        cand = jnp.where(md == m, lin, big_idx)
        return jnp.min(cand).astype(jnp.int32)

    lax.fori_loop(0, num_samples, body, start_ref[0])


def _fps_single(pos, num_samples, start):
    """FPS on one contiguous segment; returns local int32 indices."""
    n, d = pos.shape
    assert 1 <= num_samples <= n

    # Pad N to a multiple of 1024 so each coordinate plane / min_dist buffer
    # is a whole number of dense (8,128) f32 vregs.
    n_pad = ((n + _VREG - 1) // _VREG) * _VREG
    rows = n_pad // _LANES

    pos_f = pos.astype(jnp.float32)
    # Padded, transposed plane layout built in one step (no (N,D) VMEM copy).
    planes = jnp.zeros((d, n_pad), jnp.float32).at[:, :n].set(pos_f.T)
    pos_planes = planes.reshape(d, rows, _LANES)     # VMEM: dense vreg tiles
    coords_flat = planes.reshape(d * n_pad)          # SMEM: scalar gather table

    # VMEM budget: coordinate planes + min_dist scratch (+ headroom).
    vmem_bytes = (d + 1) * n_pad * 4
    vmem_limit = int(min(48 * 2 ** 20, max(4 * 2 ** 20, 2 * vmem_bytes + 2 ** 20)))

    return pl.pallas_call(
        _fps_kernel,
        out_shape=jax.ShapeDtypeStruct((num_samples,), jnp.int32),
        in_specs=[
            pl.BlockSpec(memory_space=pltpu.MemorySpace.SMEM),  # start idx
            pl.BlockSpec(memory_space=pltpu.MemorySpace.SMEM),  # n valid
            pl.BlockSpec(memory_space=pltpu.MemorySpace.SMEM),  # coords (D*Npad,)
            pl.BlockSpec(memory_space=pltpu.MemorySpace.VMEM),  # planes (D,R,128)
        ],
        out_specs=pl.BlockSpec(memory_space=pltpu.MemorySpace.SMEM),
        scratch_shapes=[pltpu.VMEM((rows, _LANES), jnp.float32)],
        compiler_params=pltpu.CompilerParams(vmem_limit_bytes=vmem_limit),
    )(jnp.reshape(jnp.asarray(start, jnp.int32), (1,)),
      jnp.array([n], jnp.int32), coords_flat, pos_planes)


def fps(pos, ratio, random_first=False, batch=None, seed=0):
    """FPS.forward. `batch`, if given, must be a host-side (concrete) array."""
    # TODO(synk): very large N (coords table > SMEM) would need an HBM-streamed
    # variant; v7x 2-TC sharding of the distance update is also not done here.
    n, d = pos.shape
    assert n >= 1

    if batch is None:
        ptr = np.array([0, n], dtype=np.int64)               # ptr = [0, N]
    else:
        batch_np = np.asarray(batch)
        assert batch_np.shape[0] == n
        bsz = int(batch_np.max()) + 1
        deg = np.bincount(batch_np, minlength=bsz)
        ptr = np.zeros(bsz + 1, dtype=np.int64)
        ptr[1:] = np.cumsum(deg)

    key = jax.random.PRNGKey(seed)
    outs = []
    for b in range(len(ptr) - 1):
        lo, hi = int(ptr[b]), int(ptr[b + 1])
        seg_n = hi - lo
        m = int(math.ceil(ratio * seg_n))
        if random_first:
            key, sub = jax.random.split(key)
            start = jax.random.randint(sub, (), 0, seg_n, dtype=jnp.int32)
        else:
            start = jnp.int32(0)
        idx = _fps_single(pos[lo:hi], m, start) + jnp.int32(lo)
        outs.append(idx)
    return outs[0] if len(outs) == 1 else jnp.concatenate(outs)


def _fps_reference(pos_np, ratio, start):
    """Pure numpy reference (float32, same accumulation order as the kernel)."""
    n, d = pos_np.shape
    m = int(math.ceil(ratio * n))
    pos_np = pos_np.astype(np.float32)
    min_dist = np.full((n,), np.float32(3.4e38), dtype=np.float32)
    out = np.zeros((m,), dtype=np.int32)
    cur = int(start)
    for s in range(m):
        out[s] = cur
        sel = pos_np[cur]
        dist = np.zeros((n,), dtype=np.float32)
        for dd in range(d):
            diff = pos_np[:, dd] - sel[dd]
            dist = dist + diff * diff
        min_dist = np.minimum(min_dist, dist)
        cur = int(np.argmax(min_dist))
    return out


if __name__ == "__main__":
    key = jax.random.PRNGKey(0)
    N, D = 200, 3          # non-multiple of 128 -> exercises the padding path
    ratio = 0.5

    pos = jax.random.normal(key, (N, D), dtype=jnp.float32)
    pos_np = np.asarray(pos)

    # --- batch=None path (ptr = [0, N]) ---
    idx = jax.block_until_ready(fps(pos, ratio=ratio, random_first=False))
    ref = _fps_reference(pos_np, ratio, start=0)
    assert idx.shape == (int(math.ceil(ratio * N)),)
    assert idx.dtype == jnp.int32
    np.testing.assert_array_equal(np.asarray(idx), ref)

    # --- batch path (two segments: 120 + 80 points) ---
    batch = np.array([0] * 120 + [1] * 80, dtype=np.int32)
    idx_b = jax.block_until_ready(
        fps(pos, ratio=ratio, random_first=False, batch=batch))
    ref0 = _fps_reference(pos_np[:120], ratio, start=0)
    ref1 = _fps_reference(pos_np[120:], ratio, start=0) + 120
    np.testing.assert_array_equal(np.asarray(idx_b),
                                  np.concatenate([ref0, ref1]))

    print("KERNEL_OK")
</pallas_src>

<mosaic_0001>
module attributes {stable_mosaic.version = 11 : i64} {
  func.func @_fps_kernel(%arg0: memref<1xi32, #tpu.memory_space<smem>>, %arg1: memref<1xi32, #tpu.memory_space<smem>>, %arg2: memref<3072xf32, #tpu.memory_space<smem>>, %arg3: memref<3x8x128xf32, #tpu.memory_space<vmem>>, %arg4: memref<100xi32, #tpu.memory_space<smem>>, %arg5: memref<8x128xf32, #tpu.memory_space<vmem>>) attributes {dimension_semantics = [], scalar_prefetch = 0 : i64, scratch_operands = 1 : i64, tpu.core_type = #tpu.core_type<tc>} {
    %c0 = arith.constant 0 : index
    %0 = memref.load %arg1[%c0] : memref<1xi32, #tpu.memory_space<smem>>
    %1 = tpu.iota {dimensions = array<i32: 0>} : vector<8x128xi32>
    %2 = tpu.iota {dimensions = array<i32: 1>} : vector<8x128xi32>
    %c128_i32 = arith.constant 128 : i32
    %3 = vector.broadcast %c128_i32 : i32 to vector<8x128xi32>
    %4 = arith.muli %1, %3 : vector<8x128xi32>
    %5 = arith.addi %4, %2 : vector<8x128xi32>
    %6 = vector.broadcast %0 : i32 to vector<8x128xi32>
    %7 = arith.cmpi slt, %5, %6 : vector<8x128xi32>
    %cst = arith.constant 3.400000e+38 : f32
    %cst_0 = arith.constant -1.000000e+00 : f32
    %8 = vector.broadcast %cst : f32 to vector<8x128xf32>
    %9 = vector.broadcast %cst_0 : f32 to vector<8x128xf32>
    %10 = arith.select %7, %8, %9 : vector<8x128xi1>, vector<8x128xf32>
    %c0_1 = arith.constant 0 : index
    %c0_2 = arith.constant 0 : index
    %11 = vector.load %arg5[%c0_1, %c0_2] : memref<8x128xf32, #tpu.memory_space<vmem>>, vector<8x128xf32>
    tpu.vector_store %arg5[%c0_1, %c0_2], %10 {strides = array<i32>} : memref<8x128xf32, #tpu.memory_space<vmem>>, vector<8x128xf32>,
    %c0_3 = arith.constant 0 : index
    %12 = memref.load %arg0[%c0_3] : memref<1xi32, #tpu.memory_space<smem>>
    %c1024_i32 = arith.constant 1024 : i32
    %c0_i32 = arith.constant 0 : i32
    %c100_i32 = arith.constant 100 : i32
    %13 = arith.addi %c0_i32, %c100_i32 : i32
    %c1_i32 = arith.constant 1 : i32
    %14 = scf.for %arg6 = %c0_i32 to %13 step %c1_i32 iter_args(%arg7 = %12) -> (i32)  : i32 {
      %15 = arith.index_cast %arg6 : i32 to index
      %16 = memref.load %arg4[%15] : memref<100xi32, #tpu.memory_space<smem>>
      memref.store %arg7, %arg4[%15] : memref<100xi32, #tpu.memory_space<smem>>
      %cst_5 = arith.constant 0.000000e+00 : f32
      %17 = vector.broadcast %cst_5 : f32 to vector<8x128xf32>
      %c0_i32_6 = arith.constant 0 : i32
      %18 = arith.addi %c0_i32_6, %arg7 : i32
      %19 = arith.index_cast %18 : i32 to index
      %20 = memref.load %arg2[%19] : memref<3072xf32, #tpu.memory_space<smem>>
      %c0_7 = arith.constant 0 : index
      %c0_8 = arith.constant 0 : index
      %c0_9 = arith.constant 0 : index
      %21 = vector.load %arg3[%c0_7, %c0_8, %c0_9] : memref<3x8x128xf32, #tpu.memory_space<vmem>>, vector<1x8x128xf32>
      %22 = vector.shape_cast %21 : vector<1x8x128xf32> to vector<8x128xf32>
      %23 = vector.broadcast %20 : f32 to vector<8x128xf32>
      %24 = arith.subf %22, %23 : vector<8x128xf32>
      %25 = arith.mulf %24, %24 : vector<8x128xf32>
      %26 = arith.addf %17, %25 : vector<8x128xf32>
      %c1024_i32_10 = arith.constant 1024 : i32
      %27 = arith.addi %c1024_i32_10, %arg7 : i32
      %28 = arith.index_cast %27 : i32 to index
      %29 = memref.load %arg2[%28] : memref<3072xf32, #tpu.memory_space<smem>>
      %c1 = arith.constant 1 : index
      %c0_11 = arith.constant 0 : index
      %c0_12 = arith.constant 0 : index
      %30 = vector.load %arg3[%c1, %c0_11, %c0_12] : memref<3x8x128xf32, #tpu.memory_space<vmem>>, vector<1x8x128xf32>
      %31 = vector.shape_cast %30 : vector<1x8x128xf32> to vector<8x128xf32>
      %32 = vector.broadcast %29 : f32 to vector<8x128xf32>
      %33 = arith.subf %31, %32 : vector<8x128xf32>
      %34 = arith.mulf %33, %33 : vector<8x128xf32>
      %35 = arith.addf %26, %34 : vector<8x128xf32>
      %c2048_i32 = arith.constant 2048 : i32
      %36 = arith.addi %c2048_i32, %arg7 : i32
      %37 = arith.index_cast %36 : i32 to index
      %38 = memref.load %arg2[%37] : memref<3072xf32, #tpu.memory_space<smem>>
      %c2 = arith.constant 2 : index
      %c0_13 = arith.constant 0 : index
      %c0_14 = arith.constant 0 : index
      %39 = vector.load %arg3[%c2, %c0_13, %c0_14] : memref<3x8x128xf32, #tpu.memory_space<vmem>>, vector<1x8x128xf32>
      %40 = vector.shape_cast %39 : vector<1x8x128xf32> to vector<8x128xf32>
      %41 = vector.broadcast %38 : f32 to vector<8x128xf32>
      %42 = arith.subf %40, %41 : vector<8x128xf32>
      %43 = arith.mulf %42, %42 : vector<8x128xf32>
      %44 = arith.addf %35, %43 : vector<8x128xf32>
      %c0_15 = arith.constant 0 : index
      %c0_16 = arith.constant 0 : index
      %45 = vector.load %arg5[%c0_15, %c0_16] : memref<8x128xf32, #tpu.memory_space<vmem>>, vector<8x128xf32>
      %46 = arith.minimumf %45, %44 : vector<8x128xf32>
      %c0_17 = arith.constant 0 : index
      %c0_18 = arith.constant 0 : index
      %47 = vector.load %arg5[%c0_17, %c0_18] : memref<8x128xf32, #tpu.memory_space<vmem>>, vector<8x128xf32>
      tpu.vector_store %arg5[%c0_17, %c0_18], %46 {strides = array<i32>} : memref<8x128xf32, #tpu.memory_space<vmem>>, vector<8x128xf32>,
      %48 = vector.shape_cast %46 : vector<8x128xf32> to vector<1x8x128xf32>
      %cst_19 = arith.constant dense<0xFF800000> : vector<1xf32>
      %49 = vector.multi_reduction <maximumf>, %48, %cst_19 [1, 2] : vector<1x8x128xf32> to vector<1xf32>
      %50 = vector.shape_cast %49 : vector<1xf32> to vector<1x1x1xf32>
      %51 = vector.extract %50[0, 0, 0] : f32 from vector<1x1x1xf32>
      %52 = vector.broadcast %51 : f32 to vector<8x128xf32>
      %53 = arith.cmpf oeq, %46, %52 : vector<8x128xf32>
      %54 = vector.broadcast %c1024_i32 : i32 to vector<8x128xi32>
      %55 = arith.select %53, %5, %54 : vector<8x128xi1>, vector<8x128xi32>
      %56 = vector.shape_cast %55 : vector<8x128xi32> to vector<1x8x128xi32>
      %cst_20 = arith.constant dense<2147483647> : vector<1xi32>
      %57 = vector.multi_reduction <minsi>, %56, %cst_20 [1, 2] : vector<1x8x128xi32> to vector<1xi32>
      %58 = vector.shape_cast %57 : vector<1xi32> to vector<1x1x1xi32>
      %59 = vector.extract %58[0, 0, 0] : i32 from vector<1x1x1xi32>
      scf.yield %59 : i32
    }
    %c100_i32_4 = arith.constant 100 : i32
    return
  }
}

</mosaic_0001>

<llo_original>
// kernel: tpu_custom_call.1
$region0: #{tpu_custom_call.1}
  #allocation0 [shape = 'u32[]', space=smem, size = 0x4, offset = 0x4, fixed_abs, tag = 'smem constant byte address 0x4 - core index']
  #allocation1 [shape = 'u32[144,128]{1,0:T(1,128)}', space=vmem, size = 0x12000, scoped, tag = 'internal scratch']
  #allocation2 [shape = 'f32[8,128]{1,0:T(8,128)}', space=vmem, size = 0x1000, scoped, tag = 'scratch operand']
  #allocation3 [shape = 's32[1]{0:T(128)S(6)}', space=smem, size = 0x200, scoped, tag = 'scoped memory for tpu_custom_call.1']
  #allocation4 [shape = 's32[1]{0:T(128)S(6)}', space=smem, size = 0x200, scoped, tag = 'scoped memory for tpu_custom_call.1']
  %s0 = inlined_call_operand.<no memory space> [shape: s32[1], index: 0, kind: input, shape index: {}]
  %s1 = inlined_call_operand.<no memory space> [shape: s32[1], index: 1, kind: input, shape index: {}]
  %s2 = inlined_call_operand.hbm [shape: f32[3072], index: 2, kind: input, shape index: {}]
  %s3 = inlined_call_operand.hbm [shape: f32[3,8,128], index: 3, kind: input, shape index: {}]
  %s4 = inlined_call_operand.hbm [shape: s32[100], index: 4, kind: output, shape index: {}]
  %s5 = sld [smem:[#allocation0]]
  $region41: #{tpu_custom_call.1} parent=0
    _
  %s7 = ssub.s32 1, %s5
  %s8 = scalar_select 0, %s7, %s5
  %9 = sst [smem:[#allocation3]] %s0
  %10 = sst [smem:[#allocation4]] %s1
  $region1: #{tpu_custom_call.1} parent=0
    #allocation5 [shape = 'u8[12288]{0}', space=smem, size = 0x3000, scoped, tag = 'input window, operand 2, single buffered']
    #allocation6 [shape = 's32[1]{0}', space=sflag, size = 0x4, scoped, tag = 'scoped memory for tpu_custom_call.1']
    #allocation7 [shape = 's32[1]{0}', space=sflag, size = 0x4, scoped, tag = 'scoped memory for tpu_custom_call.1']
    #allocation8 [shape = 's32[1]{0}', space=sflag, size = 0x4, scoped, tag = 'scoped memory for tpu_custom_call.1']
    #allocation9 [shape = 'u8[12288]{0}', space=vmem, size = 0x3000, scoped, tag = 'input window, operand 3, single buffered']
    #allocation10 [shape = 'u8[512]{0}', space=smem, size = 0x200, scoped, tag = 'output window, operand 0, single buffered']
    %11 = vsyncpa [#allocation7], 0
    %12 = vsyncpa [#allocation6], 0
    %13 = vsyncpa [#allocation8], 0
    // Predicated region
    $region2: #{tpu_custom_call.1} parent=1 // pred_check
      _
    $region3: #{tpu_custom_call.1} parent=1 // pred_check_branch
      %15 = sbr.rel (0) target = $region5
    $region4: #{tpu_custom_call.1} parent=1 // pred_region
      _
    $region5: #{tpu_custom_call.1} parent=1 // pred_fallthru
      _
    // Predicated region
    $region6: #{tpu_custom_call.1} parent=1 // pred_check
      _
    $region7: #{tpu_custom_call.1} parent=1 // pred_check_branch
      %17 = sbr.rel (0) target = $region9
    $region8: #{tpu_custom_call.1} parent=1 // pred_region
      _
    $region9: #{tpu_custom_call.1} parent=1 // pred_fallthru
      _
    // Predicated region
    $region10: #{tpu_custom_call.1} parent=1 // pred_check
      _
    $region11: #{tpu_custom_call.1} parent=1 // pred_check_branch
      %19 = sbr.rel (0) target = $region13
    $region12: #{tpu_custom_call.1} parent=1 // pred_region
      %s21 = ssub.s32 384, 384
      %22 = vsyncadd [#allocation7], %s21
      %25 = dma.hbm_to_smem %s2, 384, [#allocation5], [#allocation7]
    $region13: #{tpu_custom_call.1} parent=1 // pred_fallthru
      _
    // Predicated region
    $region14: #{tpu_custom_call.1} parent=1 // pred_check
      _
    $region15: #{tpu_custom_call.1} parent=1 // pred_check_branch
      %27 = sbr.rel (0) target = $region17
    $region16: #{tpu_custom_call.1} parent=1 // pred_region
      %s29 = ssub.s32 384, 384
      %30 = vsyncadd [#allocation6], %s29
      %s31 = sshll.u32 [#allocation9], 4
      %s32 = int_to_ptr.vmem [resolvable:$true] %s31
      %37 = dma.hbm_to_vmem [thread:$0]  %s3, 384, %s32, [#allocation6], 128, 128, 8
    $region17: #{tpu_custom_call.1} parent=1 // pred_fallthru
      _
    // Predicated region
    $region18: #{tpu_custom_call.1} parent=1 // pred_check
      _
    $region19: #{tpu_custom_call.1} parent=1 // pred_check_branch
      %39 = sbr.rel (0) target = $region21
    $region20: #{tpu_custom_call.1} parent=1 // pred_region
      %40 = dma.done [#allocation7], 384
    $region21: #{tpu_custom_call.1} parent=1 // pred_fallthru
      _
    // Predicated region
    $region22: #{tpu_custom_call.1} parent=1 // pred_check
      _
    $region23: #{tpu_custom_call.1} parent=1 // pred_check_branch
      %42 = sbr.rel (0) target = $region25
    $region24: #{tpu_custom_call.1} parent=1 // pred_region
      %43 = dma.done [#allocation6], 384
    $region25: #{tpu_custom_call.1} parent=1 // pred_fallthru
      _
    %44 = sfence
    %s45 = sld [smem:[#allocation4]]
    %v46 = vlaneseq
    %v47 = vshrl.u32 %v46, 7
    %v48 = vlaneseq
    %v49 = vand.u32 %v48, 127
    %v50 = vmul.u32 %v47, 128
    %v51 = vadd.s32 %v50, %v49
    %v52 = vstv %s45
    %vm53 = vcmp.lt.s32.totalorder %v51, %v52
    %v54 = vsel %vm53, 3.4e+38, -1.0
    %55 = vst [vmem:[#allocation2] sm:$0xff] %v54
    %s56 = sld [smem:[#allocation3]]
    loop: start=0, step=1, limit=100
    $region26: #{tpu_custom_call.1} parent=1 // loop_pre_header
      _
    $region27: #{tpu_custom_call.1} parent=1 // loop_header
      %s58 = sphi 0, %s62
      %p59 = scmp.ge.s32.totalorder %s58, 100
      %s63 = sphi %s56, %s126
    $region28: #{tpu_custom_call.1} parent=1 // loop_header_branch
      %61 = sbr.rel (%p59) target = $region32
    $region29: #{tpu_custom_call.1} parent=1 // loop_body
      %s64 = scalar_lea.smem [#allocation10], %s58
      %65 = sst [smem:[%s64]] %s63
      %s66 = sld [smem:[#allocation5 + %s63]]
      %v67 = vld [vmem:[#allocation9] sm:$0xff]
      %v68 = vstv %s66
      %v69 = vsub.f32 %v67, %v68
      %v70 = vmul.f32 %v69, %v69
      %v71 = vadd.f32 %v70, 0.0
      %s72 = sadd.s32 %s63, 1024
      %s73 = sld [smem:[#allocation5 + %s72]]
      %s74 = scalar_lea.vmem [#allocation9], 8
      %v75 = vld [vmem:[%s74] sm:$0xff]
      %v76 = vstv %s73
      %v77 = vsub.f32 %v75, %v76
      %v78 = vmul.f32 %v77, %v77
      %v79 = vadd.f32 %v71, %v78
      %s80 = sadd.s32 %s63, 2048
      %s81 = sld [smem:[#allocation5 + %s80]]
      %s82 = scalar_lea.vmem [#allocation9], 16
      %v83 = vld [vmem:[%s82] sm:$0xff]
      %v84 = vstv %s81
      %v85 = vsub.f32 %v83, %v84
      %v86 = vmul.f32 %v85, %v85
      %v87 = vadd.f32 %v79, %v86
      %v88 = vld [vmem:[#allocation2] sm:$0xff]
      %v89 = vmin.f32 %v88, %v87
      %90 = vst [vmem:[#allocation2] sm:$0xff] %v89
      %91 = vmax.xlane.f32.xlu0 %v89
      %v92 = vpop.xlane.xlu0 %91
      %v93 = vrot.slane %v92, 4
      %v94 = vmax.f32 %v92, %v93
      %v95 = vrot.slane %v94, 2
      %v96 = vmax.f32 %v94, %v95
      %v97 = vrot.slane %v96, 1
      %v98 = vmax.f32 %v96, %v97
      %s99 = vtos %v98
      %v100 = vstv %s99
      %vm101 = vcmp.eq.f32.partialorder %v89, %v100
      %v102 = vsel %vm101, %v51, 1024
      %v103 = vand.u32 %v102, 65535
      %v104 = vshra.s32 %v102, 16
      %v105 = vcvt.s32.f32 %v103
      %v106 = vcvt.s32.f32 %v104
      %107 = vmin.xlane.f32.xlu0 %v106
      %v108 = vpop.xlane.xlu0 %107
      %vm109 = vcmp.eq.f32.partialorder %v106, %v108
      %v110 = vsel %vm109, %v105, inf
      %111 = vmin.xlane.f32.xlu0 %v110
      %v112 = vpop.xlane.xlu0 %111
      %v113 = vcvt.f32.s32 %v112
      %v114 = vcvt.f32.s32 %v108
      %v115 = vshll.u32 %v114, 16
      %v116 = vadd.s32 %v115, %v113
      %v117 = vrot.slane %v116, 4
      %vm118 = vcmp.lt.s32.totalorder %v116, %v117
      %v119 = vsel %vm118, %v116, %v117
      %v120 = vrot.slane %v119, 2
      %vm121 = vcmp.lt.s32.totalorder %v119, %v120
      %v122 = vsel %vm121, %v119, %v120
      %v123 = vrot.slane %v122, 1
      %vm124 = vcmp.lt.s32.totalorder %v122, %v123
      %v125 = vsel %vm124, %v122, %v123
      %s126 = vtos %v125
    $region30: #{tpu_custom_call.1} parent=1 // loop_footer
      %s62 = sadd.s32 1, %s58
    $region31: #{tpu_custom_call.1} parent=1 // loop_footer_branch
      %57 = sbr.rel target = $region27
    $region32: #{tpu_custom_call.1} parent=1 // loop_exit
      _
    // Predicated region
    $region33: #{tpu_custom_call.1} parent=1 // pred_check
      _
    $region34: #{tpu_custom_call.1} parent=1 // pred_check_branch
      %128 = sbr.rel (0) target = $region36
    $region35: #{tpu_custom_call.1} parent=1 // pred_region
      %s130 = ssub.s32 16, 16
      %131 = vsyncadd [#allocation8], %s130
      %134 = dma.smem_to_hbm [#allocation10], 16, %s4, [#allocation8]
    $region36: #{tpu_custom_call.1} parent=1 // pred_fallthru
      _
    // Predicated region
    $region37: #{tpu_custom_call.1} parent=1 // pred_check
      _
    $region38: #{tpu_custom_call.1} parent=1 // pred_check_branch
      %136 = sbr.rel (0) target = $region40
    $region39: #{tpu_custom_call.1} parent=1 // pred_region
      %137 = dma.done [#allocation8], 16
    $region40: #{tpu_custom_call.1} parent=1 // pred_fallthru
      _
    %138 = sfence
    %139 = vsyncpa [#allocation6], 1
    %140 = vsyncpa [#allocation7], 1
    %141 = vsyncpa [#allocation8], 1

</llo_original>
